<compile_context>
chip_gen: v5e
topology: v5e:2x2
jax: 0.10.0
libtpu: 0.0.40
codegen_flags: <defaults>
</compile_context>

<pallas_src>
import functools

import jax
import jax.numpy as jnp
from jax.experimental import pallas as pl
from jax.experimental.pallas import tpu as pltpu


def mlp_kernel(x_ref, w1_ref, b1_ref, w2_ref, b2_ref, w3_ref, b3_ref, o_ref):
    # fc1 + ReLU.  x is cast to the weight dtype here (in-kernel, free under
    # DMA); matmuls accumulate in f32 on the MXU, bias-add/ReLU run in f32.
    x = x_ref[...].astype(w1_ref.dtype)
    h1 = jnp.dot(x, w1_ref[...], preferred_element_type=jnp.float32)
    h1 = jnp.maximum(h1 + b1_ref[...], 0.0)
    # fc2 + ReLU.
    h2 = jnp.dot(h1.astype(w2_ref.dtype), w2_ref[...],
                 preferred_element_type=jnp.float32)
    h2 = jnp.maximum(h2 + b2_ref[...], 0.0)
    # fc3 (logits) — written directly at the true class width (no lane padding;
    # masked vst is the right trade since the kernel is HBM-DMA bound).
    out = jnp.dot(h2.astype(w3_ref.dtype), w3_ref[...],
                  preferred_element_type=jnp.float32)
    o_ref[...] = (out + b3_ref[...]).astype(o_ref.dtype)


def prepare_params(w1, b1, w2, b2, w3, b3, compute_dtype=jnp.bfloat16):
    """One-time weight cast for the large-batch path (hoisted out of the jitted
    hot path).  Biases stay f32 — they are added onto the f32 accumulator."""
    f32 = jnp.float32
    return (w1.astype(compute_dtype), b1.astype(f32),
            w2.astype(compute_dtype), b2.astype(f32),
            w3.astype(compute_dtype), b3.astype(f32))


@functools.partial(jax.jit, static_argnames=("tile_b",))
def simple_nn_forward(x, w1, b1, w2, b2, w3, b3, *, tile_b=4096):
    """SimpleNN forward: logits = fc3(relu(fc2(relu(fc1(x))))).

    x: [B, input_size] float32.  Weights may be f32 or (via prepare_params)
    bf16.  Returns [B, num_classes] float32.
    """
    B, in_size = x.shape
    num_classes = w3.shape[1]
    out_shape = jax.ShapeDtypeStruct((B, num_classes), jnp.float32)

    if B <= tile_b:
        # Overhead-bound regime: single gridless call, everything in VMEM.
        # (f32 weights here use the MXU's default f32 path, matching jnp.)
        vmem = pl.BlockSpec(memory_space=pltpu.MemorySpace.VMEM)
        return pl.pallas_call(
            mlp_kernel,
            out_shape=out_shape,
            in_specs=[vmem] * 7,
            out_specs=vmem,
        )(x, w1, b1, w2, b2, w3, b3)

    # Large-batch regime: 1-D cdiv grid over batch (partial last block is
    # masked by Pallas — no wrapper-side padding/slicing).  Weights/biases map
    # to block (0, 0) every step so they stay VMEM-resident; only the x / out
    # tiles stream (default double buffering — the pipeline is DMA-limited, so
    # deeper buffering would only burn VMEM).  B > tile_b guarantees >= 2 grid
    # steps, so the "parallel" axis actually feeds both v7x TensorCores.
    resident = lambda a: pl.BlockSpec(a.shape, lambda i: (0, 0))
    return pl.pallas_call(
        mlp_kernel,
        out_shape=out_shape,
        grid=(pl.cdiv(B, tile_b),),
        in_specs=[
            pl.BlockSpec((tile_b, in_size), lambda i: (i, 0)),
            resident(w1), resident(b1),
            resident(w2), resident(b2),
            resident(w3), resident(b3),
        ],
        out_specs=pl.BlockSpec((tile_b, num_classes), lambda i: (i, 0)),
        compiler_params=pltpu.CompilerParams(
            dimension_semantics=("parallel",),
        ),
    )(x, w1, b1, w2, b2, w3, b3)


def init_linear(key, in_features, out_features):
    """PyTorch nn.Linear default init: U(-k, k), k = 1/sqrt(fan_in).
    Weight as [in, out]; bias as [1, out]."""
    kw, kb = jax.random.split(key)
    bound = 1.0 / jnp.sqrt(jnp.float32(in_features))
    w = jax.random.uniform(kw, (in_features, out_features), jnp.float32, -bound, bound)
    b = jax.random.uniform(kb, (1, out_features), jnp.float32, -bound, bound)
    return w, b


def reference_forward(x, w1, b1, w2, b2, w3, b3):
    h = jnp.maximum(x @ w1 + b1, 0.0)
    h = jnp.maximum(h @ w2 + b2, 0.0)
    return h @ w3 + b3


def reference_forward_bf16(x, w1, b1, w2, b2, w3, b3):
    """Reference matching the kernel's bf16-matmul / f32-accumulate path."""
    c = jnp.bfloat16
    h = jnp.maximum(jnp.dot(x.astype(c), w1.astype(c),
                            preferred_element_type=jnp.float32) + b1, 0.0)
    h = jnp.maximum(jnp.dot(h.astype(c), w2.astype(c),
                            preferred_element_type=jnp.float32) + b2, 0.0)
    return jnp.dot(h.astype(c), w3.astype(c),
                   preferred_element_type=jnp.float32) + b3


if __name__ == "__main__":
    input_size = 32
    mid_layer = 128
    out_layer = 64
    num_classes = 10

    root = jax.random.PRNGKey(0)
    kx, k1, k2, k3, kx2 = jax.random.split(root, 5)

    w1, b1 = init_linear(k1, input_size, mid_layer)
    w2, b2 = init_linear(k2, mid_layer, out_layer)
    w3, b3 = init_linear(k3, out_layer, num_classes)

    # --- tiny batch: single gridless f32 invocation, unpadded output ---
    x_small = jax.random.normal(kx, (8, input_size), jnp.float32)
    logits = jax.block_until_ready(
        simple_nn_forward(x_small, w1, b1, w2, b2, w3, b3))
    ref = reference_forward(x_small, w1, b1, w2, b2, w3, b3)
    assert logits.shape == (8, num_classes)
    assert jnp.allclose(logits, ref, atol=1e-5, rtol=1e-5), "gridless path mismatch"

    # --- larger batch: cdiv-grid batch tiling, resident bf16 weights,
    #     in-kernel x cast, exact (B, num_classes) output.
    #     tile_b=64 here only to exercise the tiled + partial-block path at a
    #     small demo size; production default is tile_b=4096. ---
    B2 = 200  # deliberately not a multiple of the tile (partial last block)
    x_big = jax.random.normal(kx2, (B2, input_size), jnp.float32)
    params_bf16 = prepare_params(w1, b1, w2, b2, w3, b3)  # one-time cast
    logits2 = jax.block_until_ready(
        simple_nn_forward(x_big, *params_bf16, tile_b=64))
    ref2 = reference_forward_bf16(x_big, w1, b1, w2, b2, w3, b3)
    assert logits2.shape == (B2, num_classes)
    assert jnp.allclose(logits2, ref2, atol=2e-2, rtol=2e-2), "tiled path mismatch"

    # TODO(synk): the module's `loss` (CrossEntropyLoss) is training-only glue,
    # not part of forward(); omitted from the kernel.
    print("KERNEL_OK")
</pallas_src>

<mosaic_0001>
module attributes {stable_mosaic.version = 11 : i64} {
  func.func @mlp_kernel(%arg0: memref<8x32xf32, #tpu.memory_space<vmem>>, %arg1: memref<32x128xf32, #tpu.memory_space<vmem>>, %arg2: memref<1x128xf32, #tpu.memory_space<vmem>>, %arg3: memref<128x64xf32, #tpu.memory_space<vmem>>, %arg4: memref<1x64xf32, #tpu.memory_space<vmem>>, %arg5: memref<64x10xf32, #tpu.memory_space<vmem>>, %arg6: memref<1x10xf32, #tpu.memory_space<vmem>>, %arg7: memref<8x10xf32, #tpu.memory_space<vmem>>) attributes {dimension_semantics = [], scalar_prefetch = 0 : i64, scratch_operands = 0 : i64, tpu.core_type = #tpu.core_type<tc>} {
    %c0 = arith.constant 0 : index
    %c0_0 = arith.constant 0 : index
    %0 = vector.load %arg0[%c0, %c0_0] : memref<8x32xf32, #tpu.memory_space<vmem>>, vector<8x32xf32>
    %c0_1 = arith.constant 0 : index
    %c0_2 = arith.constant 0 : index
    %1 = vector.load %arg1[%c0_1, %c0_2] : memref<32x128xf32, #tpu.memory_space<vmem>>, vector<32x128xf32>
    %cst = arith.constant dense<0.000000e+00> : vector<8x128xf32>
    %2 = tpu.matmul %0, %1, %cst {dimension_numbers = #tpu.dot_dimension_numbers<[1], [0], [0], [1], [0, 0, 1, 1], [], []>} : vector<8x32xf32>, vector<32x128xf32>, vector<8x128xf32> -> vector<8x128xf32>
    %c0_3 = arith.constant 0 : index
    %c0_4 = arith.constant 0 : index
    %3 = vector.load %arg2[%c0_3, %c0_4] : memref<1x128xf32, #tpu.memory_space<vmem>>, vector<1x128xf32>
    %4 = vector.broadcast %3 : vector<1x128xf32> to vector<8x128xf32>
    %5 = arith.addf %2, %4 : vector<8x128xf32>
    %cst_5 = arith.constant 0.000000e+00 : f32
    %6 = vector.broadcast %cst_5 : f32 to vector<8x128xf32>
    %7 = arith.maximumf %5, %6 : vector<8x128xf32>
    %c0_6 = arith.constant 0 : index
    %c0_7 = arith.constant 0 : index
    %8 = vector.load %arg3[%c0_6, %c0_7] : memref<128x64xf32, #tpu.memory_space<vmem>>, vector<128x64xf32>
    %cst_8 = arith.constant dense<0.000000e+00> : vector<8x64xf32>
    %9 = tpu.matmul %7, %8, %cst_8 {dimension_numbers = #tpu.dot_dimension_numbers<[1], [0], [0], [1], [0, 0, 1, 1], [], []>} : vector<8x128xf32>, vector<128x64xf32>, vector<8x64xf32> -> vector<8x64xf32>
    %c0_9 = arith.constant 0 : index
    %c0_10 = arith.constant 0 : index
    %10 = vector.load %arg4[%c0_9, %c0_10] : memref<1x64xf32, #tpu.memory_space<vmem>>, vector<1x64xf32>
    %11 = vector.broadcast %10 : vector<1x64xf32> to vector<8x64xf32>
    %12 = arith.addf %9, %11 : vector<8x64xf32>
    %cst_11 = arith.constant 0.000000e+00 : f32
    %13 = vector.broadcast %cst_11 : f32 to vector<8x64xf32>
    %14 = arith.maximumf %12, %13 : vector<8x64xf32>
    %c0_12 = arith.constant 0 : index
    %c0_13 = arith.constant 0 : index
    %15 = vector.load %arg5[%c0_12, %c0_13] : memref<64x10xf32, #tpu.memory_space<vmem>>, vector<64x10xf32>
    %cst_14 = arith.constant dense<0.000000e+00> : vector<8x10xf32>
    %16 = tpu.matmul %14, %15, %cst_14 {dimension_numbers = #tpu.dot_dimension_numbers<[1], [0], [0], [1], [0, 0, 1, 1], [], []>} : vector<8x64xf32>, vector<64x10xf32>, vector<8x10xf32> -> vector<8x10xf32>
    %c0_15 = arith.constant 0 : index
    %c0_16 = arith.constant 0 : index
    %17 = vector.load %arg6[%c0_15, %c0_16] : memref<1x10xf32, #tpu.memory_space<vmem>>, vector<1x10xf32>
    %18 = vector.broadcast %17 : vector<1x10xf32> to vector<8x10xf32>
    %19 = arith.addf %16, %18 : vector<8x10xf32>
    %c0_17 = arith.constant 0 : index
    %c0_18 = arith.constant 0 : index
    %20 = vector.load %arg7[%c0_17, %c0_18] : memref<8x10xf32, #tpu.memory_space<vmem>>, vector<8x10xf32>
    tpu.vector_store %arg7[%c0_17, %c0_18], %19 {strides = array<i32>} : memref<8x10xf32, #tpu.memory_space<vmem>>, vector<8x10xf32>,
    return
  }
}

</mosaic_0001>

<llo_original>
// kernel: simple_nn_forward.1
$region0: #{simple_nn_forward.1}
  #allocation0 [shape = 'u32[]', space=smem, size = 0x4, offset = 0x4, fixed_abs, tag = 'smem constant byte address 0x4 - core index']
  #allocation1 [shape = 'u32[72,128]{1,0:T(1,128)}', space=vmem, size = 0x9000, scoped, tag = 'internal scratch']
  %s0 = inlined_call_operand.vmem [shape: f32[8,32], index: 0, kind: input, shape index: {}]
  %s1 = inlined_call_operand.vmem [shape: f32[32,128], index: 1, kind: input, shape index: {}]
  %s2 = inlined_call_operand.vmem [shape: f32[1,128], index: 2, kind: input, shape index: {}]
  %s3 = inlined_call_operand.vmem [shape: f32[128,64], index: 3, kind: input, shape index: {}]
  %s4 = inlined_call_operand.vmem [shape: f32[1,64], index: 4, kind: input, shape index: {}]
  %s5 = inlined_call_operand.vmem [shape: f32[64,10], index: 5, kind: input, shape index: {}]
  %s6 = inlined_call_operand.vmem [shape: f32[1,10], index: 6, kind: input, shape index: {}]
  %s7 = inlined_call_operand.hbm [shape: f32[8,10], index: 7, kind: output, shape index: {}]
  %s8 = sld [smem:[#allocation0]]
  $region38: #{simple_nn_forward.1} parent=0
    _
  %s10 = ssub.s32 1, %s8
  %s11 = scalar_select 0, %s10, %s8
  $region1: #{simple_nn_forward.1} parent=0
    #allocation2 [shape = 'u8[4096]{0}', space=vmem, size = 0x1000, scoped, tag = 'output window, operand 0, single buffered']
    #allocation3 [shape = 's32[1]{0}', space=sflag, size = 0x4, scoped, tag = 'scoped memory for simple_nn_forward.1']
    %12 = vsyncpa [#allocation3], 0
    // Predicated region
    $region2: #{simple_nn_forward.1} parent=1 // pred_check
      _
    $region3: #{simple_nn_forward.1} parent=1 // pred_check_branch
      %14 = sbr.rel (0) target = $region5
    $region4: #{simple_nn_forward.1} parent=1 // pred_region
      _
    $region5: #{simple_nn_forward.1} parent=1 // pred_fallthru
      _
    // Predicated region
    $region6: #{simple_nn_forward.1} parent=1 // pred_check
      _
    $region7: #{simple_nn_forward.1} parent=1 // pred_check_branch
      %16 = sbr.rel (0) target = $region9
    $region8: #{simple_nn_forward.1} parent=1 // pred_region
      _
    $region9: #{simple_nn_forward.1} parent=1 // pred_fallthru
      _
    // Predicated region
    $region10: #{simple_nn_forward.1} parent=1 // pred_check
      _
    $region11: #{simple_nn_forward.1} parent=1 // pred_check_branch
      %18 = sbr.rel (0) target = $region13
    $region12: #{simple_nn_forward.1} parent=1 // pred_region
      _
    $region13: #{simple_nn_forward.1} parent=1 // pred_fallthru
      _
    // Predicated region
    $region14: #{simple_nn_forward.1} parent=1 // pred_check
      _
    $region15: #{simple_nn_forward.1} parent=1 // pred_check_branch
      %20 = sbr.rel (0) target = $region17
    $region16: #{simple_nn_forward.1} parent=1 // pred_region
      _
    $region17: #{simple_nn_forward.1} parent=1 // pred_fallthru
      _
    // Predicated region
    $region18: #{simple_nn_forward.1} parent=1 // pred_check
      _
    $region19: #{simple_nn_forward.1} parent=1 // pred_check_branch
      %22 = sbr.rel (0) target = $region21
    $region20: #{simple_nn_forward.1} parent=1 // pred_region
      _
    $region21: #{simple_nn_forward.1} parent=1 // pred_fallthru
      _
    // Predicated region
    $region22: #{simple_nn_forward.1} parent=1 // pred_check
      _
    $region23: #{simple_nn_forward.1} parent=1 // pred_check_branch
      %24 = sbr.rel (0) target = $region25
    $region24: #{simple_nn_forward.1} parent=1 // pred_region
      _
    $region25: #{simple_nn_forward.1} parent=1 // pred_fallthru
      _
    // Predicated region
    $region26: #{simple_nn_forward.1} parent=1 // pred_check
      _
    $region27: #{simple_nn_forward.1} parent=1 // pred_check_branch
      %26 = sbr.rel (0) target = $region29
    $region28: #{simple_nn_forward.1} parent=1 // pred_region
      _
    $region29: #{simple_nn_forward.1} parent=1 // pred_fallthru
      _
    %v27 = vld [vmem:[%s0] sm:$0xff]
    %v28 = vld [vmem:[%s1] sm:$0xff]
    %v29 = vld [vmem:[%s1 + $0x8] sm:$0xff]
    %v30 = vld [vmem:[%s1 + $0x10] sm:$0xff]
    %v31 = vld [vmem:[%s1 + $0x18] sm:$0xff]
    %v32 = vld [vmem:[%s2] sm:$0x1]
    %v34 = vperm.slane %v32, 0
    %vm36 = vcmask 261120
    %v38 = vsel %vm36, %v27, 0
    %40 = vmatpush.msra.mxu0 0.0
    %41 = vmatpush.msra.mxu0 0.0
    %42 = vmatpush.msra.mxu0 0.0
    %43 = vmatpush.msra.mxu0 0.0
    %44 = vmatpush.msra.mxu0 0.0
    %45 = vmatpush.msra.mxu0 0.0
    %46 = vmatpush.msra.mxu0 0.0
    %47 = vmatpush.msra.mxu0 0.0
    %48 = vmatpush.msra.mxu0 0.0
    %49 = vmatpush.msra.mxu0 0.0
    %50 = vmatpush.msra.mxu0 0.0
    %51 = vmatpush.msra.mxu0 0.0
    %52 = vmatpush.msra.mxu0 %v31
    %53 = vmatpush.msra.mxu0 %v30
    %54 = vmatpush.msra.mxu0 %v29
    %55 = vmatpush.msra.mxu0 %v28
    %56 = vmatmul.f32.gmra.mxu0 %v38
    %v57 = vpop.f32.mrf.mxu0
    %v58 = vadd.f32 %v34, %v57
    %59 = vdwg.mxu0
    %v60 = vmax.f32 %v58, 0.0
    %v61 = vld [vmem:[%s3] sm:$0xff]
    %v62 = vld [vmem:[%s3 + $0x8] sm:$0xff]
    %v63 = vld [vmem:[%s3 + $0x10] sm:$0xff]
    %v64 = vld [vmem:[%s3 + $0x18] sm:$0xff]
    %v65 = vld [vmem:[%s3 + $0x20] sm:$0xff]
    %v66 = vld [vmem:[%s3 + $0x28] sm:$0xff]
    %v67 = vld [vmem:[%s3 + $0x30] sm:$0xff]
    %v68 = vld [vmem:[%s3 + $0x38] sm:$0xff]
    %v69 = vld [vmem:[%s3 + $0x40] sm:$0xff]
    %v70 = vld [vmem:[%s3 + $0x48] sm:$0xff]
    %v71 = vld [vmem:[%s3 + $0x50] sm:$0xff]
    %v72 = vld [vmem:[%s3 + $0x58] sm:$0xff]
    %v73 = vld [vmem:[%s3 + $0x60] sm:$0xff]
    %v74 = vld [vmem:[%s3 + $0x68] sm:$0xff]
    %v75 = vld [vmem:[%s3 + $0x70] sm:$0xff]
    %v76 = vld [vmem:[%s3 + $0x78] sm:$0xff]
    %v77 = vld [vmem:[%s4] sm:$0x1]
    %v79 = vperm.slane %v77, 0
    %81 = vmatpush.msra.mxu0 %v76
    %82 = vmatpush.msra.mxu0 %v75
    %83 = vmatpush.msra.mxu0 %v74
    %84 = vmatpush.msra.mxu0 %v73
    %85 = vmatpush.msra.mxu0 %v72
    %86 = vmatpush.msra.mxu0 %v71
    %87 = vmatpush.msra.mxu0 %v70
    %88 = vmatpush.msra.mxu0 %v69
    %89 = vmatpush.msra.mxu0 %v68
    %90 = vmatpush.msra.mxu0 %v67
    %91 = vmatpush.msra.mxu0 %v66
    %92 = vmatpush.msra.mxu0 %v65
    %93 = vmatpush.msra.mxu0 %v64
    %94 = vmatpush.msra.mxu0 %v63
    %95 = vmatpush.msra.mxu0 %v62
    %96 = vmatpush.msra.mxu0 %v61
    %97 = vmatmul.f32.gmra.mxu0 %v60
    %v98 = vpop.f32.mrf.mxu0
    %v99 = vadd.f32 %v79, %v98
    %100 = vdwg.mxu0
    %v101 = vmax.f32 %v99, 0.0
    %v102 = vld [vmem:[%s5] sm:$0xff]
    %v103 = vld [vmem:[%s5 + $0x8] sm:$0xff]
    %v104 = vld [vmem:[%s5 + $0x10] sm:$0xff]
    %v105 = vld [vmem:[%s5 + $0x18] sm:$0xff]
    %v106 = vld [vmem:[%s5 + $0x20] sm:$0xff]
    %v107 = vld [vmem:[%s5 + $0x28] sm:$0xff]
    %v108 = vld [vmem:[%s5 + $0x30] sm:$0xff]
    %v109 = vld [vmem:[%s5 + $0x38] sm:$0xff]
    %v110 = vld [vmem:[%s6] sm:$0x1]
    %v112 = vperm.slane %v110, 0
    %vm114 = vcmask 523264
    %v116 = vsel %vm114, %v101, 0
    %118 = vmatpush.msra.mxu0 0.0
    %119 = vmatpush.msra.mxu0 0.0
    %120 = vmatpush.msra.mxu0 0.0
    %121 = vmatpush.msra.mxu0 0.0
    %122 = vmatpush.msra.mxu0 0.0
    %123 = vmatpush.msra.mxu0 0.0
    %124 = vmatpush.msra.mxu0 0.0
    %125 = vmatpush.msra.mxu0 0.0
    %126 = vmatpush.msra.mxu0 %v109
    %127 = vmatpush.msra.mxu0 %v108
    %128 = vmatpush.msra.mxu0 %v107
    %129 = vmatpush.msra.mxu0 %v106
    %130 = vmatpush.msra.mxu0 %v105
    %131 = vmatpush.msra.mxu0 %v104
    %132 = vmatpush.msra.mxu0 %v103
    %133 = vmatpush.msra.mxu0 %v102
    %134 = vmatmul.f32.gmra.mxu0 %v116
    %v135 = vpop.f32.mrf.mxu0
    %v136 = vadd.f32 %v112, %v135
    %137 = vdwg.mxu0
    %vm138 = vcmask 80896
    %139 = vst.msk [vmem:[#allocation2] sm:$0xff] %vm138, %v136
    // Predicated region
    $region30: #{simple_nn_forward.1} parent=1 // pred_check
      _
    $region31: #{simple_nn_forward.1} parent=1 // pred_check_branch
      %141 = sbr.rel (0) target = $region33
    $region32: #{simple_nn_forward.1} parent=1 // pred_region
      %143 = vsyncadd [#allocation3], 0
      %s145 = sshll.u32 [#allocation2], 4
      %s146 = int_to_ptr.vmem [resolvable:$true] %s145
      %s147 = sshll.u32 %s7, 4
      %s148 = int_to_ptr.hbm [resolvable:$true] %s147
      %150 = dma.vmem_to_hbm [thread:$0]  %s146, 128, %s148, [#allocation3]
    $region33: #{simple_nn_forward.1} parent=1 // pred_fallthru
      _
    // Predicated region
    $region34: #{simple_nn_forward.1} parent=1 // pred_check
      _
    $region35: #{simple_nn_forward.1} parent=1 // pred_check_branch
      %152 = sbr.rel (0) target = $region37
    $region36: #{simple_nn_forward.1} parent=1 // pred_region
      %154 = dma.done [#allocation3], 128
    $region37: #{simple_nn_forward.1} parent=1 // pred_fallthru
      _
    %155 = vsyncpa [#allocation3], 1

</llo_original>
